<compile_context>
chip_gen: v7x
topology: tpu7x:2x2x1
jax: 0.10.0
libtpu: 0.0.40
codegen_flags: <defaults>
</compile_context>

<pallas_src>
import jax
import jax.numpy as jnp
from jax.experimental import pallas as pl
from jax.experimental.pallas import tpu as pltpu


_LANES = 512           # lane-dense 2-D view width (multiple of 128)
_MAX_TILE_ROWS = 2048  # 2048 * 512 * 4B = 4 MiB per f32 block


def _fake_quant_bf16_kernel(x_ref, o_ref):
    # bf16 round-trip: quantize + dequantize simulation (round-to-nearest-even)
    o_ref[...] = x_ref[...].astype(jnp.bfloat16).astype(o_ref.dtype)


def _bf16_roundtrip_2d(x2d, tile_rows):
    """x2d: (rows, _LANES) float array; tile_rows is a multiple of 8 or == rows."""
    rows, lanes = x2d.shape
    grid = (pl.cdiv(rows, tile_rows),)
    nbytes = x2d.size * x2d.dtype.itemsize
    return pl.pallas_call(
        _fake_quant_bf16_kernel,
        out_shape=jax.ShapeDtypeStruct((rows, lanes), x2d.dtype),
        grid_spec=pltpu.PrefetchScalarGridSpec(
            num_scalar_prefetch=0,
            grid=grid,
            in_specs=[pl.BlockSpec((tile_rows, lanes), lambda i: (i, 0))],
            out_specs=pl.BlockSpec((tile_rows, lanes), lambda i: (i, 0)),
        ),
        compiler_params=pltpu.CompilerParams(
            dimension_semantics=("parallel",),
            vmem_limit_bytes=48 * 1024 * 1024,
        ),
        cost_estimate=pl.CostEstimate(
            flops=x2d.size, transcendentals=0, bytes_accessed=2 * nbytes),
    )(x2d)


def _fake_quant_apply(X):
    """bf16 round-trip of an arbitrary-shaped float array via the tiled kernel."""
    total = X.size
    if total == 0:
        return X
    flat = X.reshape(-1)
    padded_total = ((total + _LANES - 1) // _LANES) * _LANES
    if padded_total != total:
        flat = jnp.pad(flat, (0, padded_total - total))
    rows = padded_total // _LANES
    if rows <= _MAX_TILE_ROWS:
        tile_rows = rows            # full-extent block: any row count allowed
    else:
        tile_rows = _MAX_TILE_ROWS  # multiple of 8; edge block masked if needed
    y2d = _bf16_roundtrip_2d(flat.reshape(rows, _LANES), tile_rows)
    y = y2d.reshape(-1)
    if padded_total != total:
        y = y[:total]
    return y.reshape(X.shape)


class FakeQuantizeBFloat16:
    """JAX/Pallas port of tinynn FakeQuantizeBFloat16."""

    def __init__(self, **observer_kwargs):
        # Source of truth is a Python bool (no device sync / host readback in
        # forward).  Keep a uint8 buffer for API parity with the torch module.
        self._enabled = True
        self.fake_quant_enabled = jnp.array([1], dtype=jnp.uint8)

    def enable_fake_quant(self, enabled=True):
        self._enabled = bool(enabled)
        self.fake_quant_enabled = jnp.array([1 if self._enabled else 0],
                                            dtype=jnp.uint8)

    def disable_fake_quant(self):
        self.enable_fake_quant(False)

    def __call__(self, X):
        return self.forward(X)

    def forward(self, X):
        if self._enabled:
            if isinstance(X, (tuple, list)):
                return [self.forward(x) for x in X]
            elif isinstance(X, jnp.ndarray) and jnp.issubdtype(
                    X.dtype, jnp.floating):
                # bf16 round-trip of a bf16 tensor is the identity: skip the
                # kernel entirely (saves a full HBM read + write).
                if X.dtype == jnp.bfloat16:
                    return X
                return _fake_quant_apply(X)
        return X


if __name__ == "__main__":
    key = jax.random.PRNGKey(0)
    # NCHW input, consistent with a conv activation fake-quant use case
    x = jax.random.normal(key, (2, 4, 16, 16), dtype=jnp.float32) * 3.0

    fq = FakeQuantizeBFloat16()
    y = jax.block_until_ready(fq(x))

    # reference: plain-JAX bf16 round-trip
    y_ref = x.astype(jnp.bfloat16).astype(jnp.float32)
    assert y.shape == x.shape and y.dtype == x.dtype
    assert jnp.array_equal(y, y_ref), "mismatch vs bf16 round-trip reference"

    # oddly-shaped input (size not a multiple of 512) goes through padded path
    x_odd = jax.random.normal(jax.random.PRNGKey(1), (3, 5, 7),
                              dtype=jnp.float32) * 2.0
    y_odd = jax.block_until_ready(fq(x_odd))
    assert jnp.array_equal(y_odd,
                           x_odd.astype(jnp.bfloat16).astype(jnp.float32))

    # bf16 input: identity fast path (no kernel launch)
    x_bf16 = x.astype(jnp.bfloat16)
    assert fq(x_bf16) is x_bf16

    # disabled path: identity pass-through
    fq.disable_fake_quant()
    y_id = jax.block_until_ready(fq(x))
    assert jnp.array_equal(y_id, x)

    # non-float tensors pass through unchanged even when enabled
    fq.enable_fake_quant()
    xi = jnp.arange(8, dtype=jnp.int32)
    assert jnp.array_equal(fq(xi), xi)

    # list input maps element-wise
    outs = fq([x, x * 0.5])
    jax.block_until_ready(outs)
    assert jnp.array_equal(outs[0], y_ref)

    print("KERNEL_OK")
</pallas_src>

<mosaic_0001>
module attributes {stable_mosaic.version = 11 : i64} {
  func.func @_fake_quant_bf16_kernel(%arg0: i32, %arg1: memref<4x512xf32, #tpu.memory_space<vmem>>, %arg2: memref<4x512xf32, #tpu.memory_space<vmem>>) attributes {dimension_semantics = [#tpu.dimension_semantics<parallel>], iteration_bounds = array<i64: 1>, scalar_prefetch = 0 : i64, scratch_operands = 0 : i64, tpu.core_type = #tpu.core_type<tc>, window_params = [{transform_indices = @transform_0, window_bounds = array<i64: 4, 512>}, {transform_indices = @transform_1, window_bounds = array<i64: 4, 512>}]} {
    %c0 = arith.constant 0 : index
    %c0_0 = arith.constant 0 : index
    %0 = vector.load %arg1[%c0, %c0_0] : memref<4x512xf32, #tpu.memory_space<vmem>>, vector<4x512xf32>
    %1 = arith.truncf %0 : vector<4x512xf32> to vector<4x512xbf16>
    %2 = arith.extf %1 : vector<4x512xbf16> to vector<4x512xf32>
    %c0_1 = arith.constant 0 : index
    %c0_2 = arith.constant 0 : index
    %3 = vector.load %arg2[%c0_1, %c0_2] : memref<4x512xf32, #tpu.memory_space<vmem>>, vector<4x512xf32>
    tpu.vector_store %arg2[%c0_1, %c0_2], %2 {strides = array<i32>} : memref<4x512xf32, #tpu.memory_space<vmem>>, vector<4x512xf32>,
    return
  }
  func.func @transform_0(%arg0: i32) -> (i32, i32) {
    %c0_i32 = arith.constant 0 : i32
    %c0_i32_0 = arith.constant 0 : i32
    return %arg0, %c0_i32 : i32, i32
  }
  func.func @transform_1(%arg0: i32) -> (i32, i32) {
    %c0_i32 = arith.constant 0 : i32
    %c0_i32_0 = arith.constant 0 : i32
    return %arg0, %c0_i32 : i32, i32
  }
}

</mosaic_0001>

<llo_original>
// kernel: tpu_custom_call.1
$region0: #{tpu_custom_call.1}
  #allocation0 [shape = 'u32[]', space=smem, size = 0x4, offset = 0x4, fixed_abs, tag = 'smem constant byte address 0x4 - core index']
  #allocation1 [shape = 'u32[144,128]{1,0:T(1,128)}', space=vmem, size = 0x12000, scoped, tag = 'internal scratch']
  %s0 = inlined_call_operand.hbm [shape: f32[4,512], index: 0, kind: input, shape index: {}]
  %s1 = inlined_call_operand.hbm [shape: f32[4,512], index: 1, kind: output, shape index: {}]
  %s2 = sld [smem:[#allocation0]]
  $region18: #{tpu_custom_call.1} parent=0
    _
  %s4 = ssub.s32 1, %s2
  %s5 = scalar_select 0, %s4, %s2
  $region1: #{tpu_custom_call.1} parent=0
    #allocation2 [shape = 'u8[8192]{0}', space=vmem, size = 0x2000, scoped, tag = 'input window, operand 0, single buffered']
    #allocation3 [shape = 's32[1]{0}', space=sflag, size = 0x4, scoped, tag = 'scoped memory for tpu_custom_call.1']
    #allocation4 [shape = 's32[1]{0}', space=sflag, size = 0x4, scoped, tag = 'scoped memory for tpu_custom_call.1']
    #allocation5 [shape = 'u8[8192]{0}', space=vmem, size = 0x2000, scoped, tag = 'output window, operand 0, single buffered']
    %6 = vsyncpa [#allocation3], 0
    %7 = vsyncpa [#allocation4], 0
    // Predicated region
    $region2: #{tpu_custom_call.1} parent=1 // pred_check
      _
    $region3: #{tpu_custom_call.1} parent=1 // pred_check_branch
      %9 = sbr.rel (0) target = $region5
    $region4: #{tpu_custom_call.1} parent=1 // pred_region
      %s11 = ssub.s32 256, 256
      %12 = vsyncadd [#allocation3], %s11
      %s14 = sshll.u32 [#allocation2], 4
      %s15 = int_to_ptr.vmem [resolvable:$true] %s14
      %17 = dma.hbm_to_vmem [thread:$0]  %s0, 256, %s15, [#allocation3]
    $region5: #{tpu_custom_call.1} parent=1 // pred_fallthru
      _
    // Predicated region
    $region6: #{tpu_custom_call.1} parent=1 // pred_check
      _
    $region7: #{tpu_custom_call.1} parent=1 // pred_check_branch
      %19 = sbr.rel (0) target = $region9
    $region8: #{tpu_custom_call.1} parent=1 // pred_region
      %20 = dma.done [#allocation3], 256
    $region9: #{tpu_custom_call.1} parent=1 // pred_fallthru
      _
    %v21 = vld [vmem:[#allocation2] sm:$0xff]
    %v22 = vld [vmem:[#allocation2 + $0x8] sm:$0xff]
    %v25 = vcombine.high %v21, %v21
    %v26 = vcombine.high %v22, %v22
    %v29 = vpack.c.bf16 %v21, %v21
    %v30 = vpack.c.bf16 %v25, %v25
    %v31 = vpack.c.bf16 %v22, %v22
    %v32 = vpack.c.bf16 %v26, %v26
    %v33 = vunpack.c.l.bf16 %v29
    %v34 = vunpack.c.l.bf16 %v30
    %v35 = vunpack.c.l.bf16 %v31
    %v36 = vunpack.c.l.bf16 %v32
    %v41 = vcombine.low %v33, %v34
    %v42 = vcombine.low %v35, %v36
    %45 = vst [vmem:[#allocation5] sm:$0xff] %v41
    %46 = vst [vmem:[#allocation5 + $0x8] sm:$0xff] %v42
    // Predicated region
    $region10: #{tpu_custom_call.1} parent=1 // pred_check
      _
    $region11: #{tpu_custom_call.1} parent=1 // pred_check_branch
      %48 = sbr.rel (0) target = $region13
    $region12: #{tpu_custom_call.1} parent=1 // pred_region
      %s50 = ssub.s32 256, 256
      %51 = vsyncadd [#allocation4], %s50
      %s53 = sshll.u32 [#allocation5], 4
      %s54 = int_to_ptr.vmem [resolvable:$true] %s53
      %56 = dma.vmem_to_hbm [thread:$0]  %s54, 256, %s1, [#allocation4]
    $region13: #{tpu_custom_call.1} parent=1 // pred_fallthru
      _
    // Predicated region
    $region14: #{tpu_custom_call.1} parent=1 // pred_check
      _
    $region15: #{tpu_custom_call.1} parent=1 // pred_check_branch
      %58 = sbr.rel (0) target = $region17
    $region16: #{tpu_custom_call.1} parent=1 // pred_region
      %59 = dma.done [#allocation4], 256
    $region17: #{tpu_custom_call.1} parent=1 // pred_fallthru
      _
    %60 = vsyncpa [#allocation3], 1
    %61 = vsyncpa [#allocation4], 1

</llo_original>
